<compile_context>
chip_gen: v5e
topology: v5e:2x2
jax: 0.10.0
libtpu: 0.0.40
codegen_flags: <defaults>
</compile_context>

<pallas_src>
import jax
import jax.numpy as jnp
from jax import lax
from jax.experimental import pallas as pl
from jax.experimental.pallas import tpu as pltpu


def releminer_kernel(ids_ref, table_ref, time_ref, tw_ref, bias_ref, out_ref):
    # ids_ref   : (B, S) int32, S = 3L + N, ids already offset per segment so a
    #             single shared vocab axis of size 3V + Vn indexes all segments.
    # table_ref : (3V + Vn, 2) f32 — embedding tables pre-multiplied by their
    #             W_out segments and mean-pool scales (wrapper-side fold).
    # time_ref  : (B, 1) f32; tw_ref/bias_ref: (1, 2) folded time weight / bias.
    ids = ids_ref[...]
    rows, seq = ids.shape
    vocab = table_ref.shape[0]

    iota_v = lax.broadcasted_iota(jnp.int32, (rows, vocab), 1)
    counts = jnp.zeros((rows, vocab), jnp.float32)
    # Short unrolled VPU loop over the (small, static) combined sequence length.
    # TODO(synk): at larger S switch to lax.fori_loop(..., unroll=k) to bound
    #             live ranges (scaling guard); at S=32 the static unroll is fine.
    for s in range(seq):
        counts = counts + (ids[:, s:s + 1] == iota_v).astype(jnp.float32)

    # ONE MXU push replaces all embedding lookups + the output projection.
    preds = jnp.dot(counts, table_ref[...], preferred_element_type=jnp.float32)

    # TimeEncoder + its W_out segment, folded to a pure-VPU multiply-add.
    out_ref[...] = preds + time_ref[...] * tw_ref[...] + bias_ref[...]


def releminer_forward(text1, text2, graph_data, scene_text, time_data, params):
    B, L = text1.shape
    N = graph_data.shape[1]
    tok_tab = params["tok_tab"]          # (V,  D_text)
    node_tab = params["node_tab"]        # (Vn, D_node)
    V, d_text = tok_tab.shape
    Vn, d_node = node_tab.shape
    t_dim = params["w_time"].shape[1]

    # Split W_out per concatenated segment.  Torch concat order is
    # [text1 | text2 | graph | scene_text | time].
    w = params["w_out"]
    o = 0
    w1 = w[o:o + d_text]; o += d_text
    w2 = w[o:o + d_text]; o += d_text
    wg = w[o:o + d_node]; o += d_node
    ws = w[o:o + d_text]; o += d_text
    wt = w[o:o + t_dim]

    # Fold output-projection weights AND mean-pool scales into the tables, then
    # stack into one (3V + Vn, 2) lookup-and-project table.
    folded_table = jnp.concatenate(
        [tok_tab @ (w1 * (1.0 / L)),
         tok_tab @ (w2 * (1.0 / L)),
         tok_tab @ (ws * (1.0 / L)),
         node_tab @ (wg * (1.0 / N))], axis=0)            # (3V + Vn, 2)

    # Fold TimeEncoder (Linear(1, T)) through its W_out segment to (1, 2).
    time_w = params["w_time"] @ wt                         # (1, 2)
    bias = params["b_time"] @ wt + params["b_out"]         # (1, 2)

    # Offset ids per segment so they index the stacked folded table directly.
    combined_ids = jnp.concatenate(
        [text1,
         text2 + V,
         scene_text + 2 * V,
         graph_data + 3 * V], axis=1).astype(jnp.int32)    # (B, 3L + N)

    inputs = (combined_ids, folded_table, time_data, time_w, bias)

    in_specs = [pl.BlockSpec(memory_space=pltpu.MemorySpace.VMEM)
                for _ in inputs]
    out_spec = pl.BlockSpec(memory_space=pltpu.MemorySpace.VMEM)

    S = combined_ids.shape[1]
    vocab = folded_table.shape[0]
    cost = pl.CostEstimate(
        flops=2 * B * vocab * (S + 2),
        transcendentals=0,
        bytes_accessed=(combined_ids.size * 4 + folded_table.size * 4
                        + time_data.size * 4 + 2 * 4 + 2 * 4 + B * 2 * 4),
    )

    fn = pl.pallas_call(
        releminer_kernel,
        out_shape=jax.ShapeDtypeStruct((B, 2), jnp.float32),
        in_specs=in_specs,
        out_specs=out_spec,
        cost_estimate=cost,
        compiler_params=pltpu.CompilerParams(
            vmem_limit_bytes=32 * 1024 * 1024),
    )
    return fn(*inputs)


def init_params(key, token_num, text_emb_dim, node_num, node_emb_dim, time_dim):
    k1, k2, k3, k4, k5, k6 = jax.random.split(key, 6)
    in_dim = 3 * text_emb_dim + node_emb_dim + time_dim
    return {
        "tok_tab": jax.random.normal(k1, (token_num, text_emb_dim), jnp.float32) * 0.02,
        "node_tab": jax.random.normal(k2, (node_num, node_emb_dim), jnp.float32) * 0.02,
        "w_time": jax.random.normal(k3, (1, time_dim), jnp.float32) * 0.1,
        "b_time": jax.random.normal(k4, (1, time_dim), jnp.float32) * 0.01,
        "w_out": jax.random.normal(k5, (in_dim, 2), jnp.float32) * 0.05,
        "b_out": jax.random.normal(k6, (1, 2), jnp.float32) * 0.01,
    }


def reference_forward(text1, text2, graph_data, scene_text, time_data, params):
    # Pure-JAX reference mirroring the torch module's forward (unfolded).
    def text_enc(ids):
        return jnp.mean(jnp.take(params["tok_tab"], ids, axis=0), axis=1)

    def graph_enc(ids):
        return jnp.mean(jnp.take(params["node_tab"], ids, axis=0), axis=1)

    te1 = text_enc(text1)
    te2 = text_enc(text2)
    ge = graph_enc(graph_data)
    se = text_enc(scene_text)
    time_emb = time_data @ params["w_time"] + params["b_time"]
    all_emb = jnp.concatenate([te1, te2, ge, se, time_emb], axis=-1)
    return all_emb @ params["w_out"] + params["b_out"]


if __name__ == "__main__":
    # Small shapes consistent with the module.
    B, L, N = 4, 8, 8
    token_num, text_emb_dim = 64, 32
    node_num, node_emb_dim = 32, 32
    time_dim = 16

    key = jax.random.PRNGKey(0)
    kp, k1, k2, k3, k4, k5 = jax.random.split(key, 6)

    params = init_params(kp, token_num, text_emb_dim, node_num, node_emb_dim, time_dim)

    text1 = jax.random.randint(k1, (B, L), 0, token_num, dtype=jnp.int32)
    text2 = jax.random.randint(k2, (B, L), 0, token_num, dtype=jnp.int32)
    scene_text = jax.random.randint(k3, (B, L), 0, token_num, dtype=jnp.int32)
    graph_data = jax.random.randint(k4, (B, N), 0, node_num, dtype=jnp.int32)
    time_data = jax.random.normal(k5, (B, 1), jnp.float32)

    preds = releminer_forward(text1, text2, graph_data, scene_text, time_data, params)
    preds = jax.block_until_ready(preds)

    ref = reference_forward(text1, text2, graph_data, scene_text, time_data, params)
    assert preds.shape == (B, 2)
    assert jnp.allclose(preds, ref, atol=1e-4, rtol=1e-4), (preds, ref)

    print("KERNEL_OK")
</pallas_src>

<mosaic_0001>
module attributes {stable_mosaic.version = 11 : i64} {
  func.func @releminer_kernel(%arg0: memref<4x32xi32, #tpu.memory_space<vmem>>, %arg1: memref<224x2xf32, #tpu.memory_space<vmem>>, %arg2: memref<4x1xf32, #tpu.memory_space<vmem>>, %arg3: memref<1x2xf32, #tpu.memory_space<vmem>>, %arg4: memref<1x2xf32, #tpu.memory_space<vmem>>, %arg5: memref<4x2xf32, #tpu.memory_space<vmem>>) attributes {dimension_semantics = [], scalar_prefetch = 0 : i64, scratch_operands = 0 : i64, tpu.core_type = #tpu.core_type<tc>} {
    %c0 = arith.constant 0 : index
    %c0_0 = arith.constant 0 : index
    %0 = vector.load %arg0[%c0, %c0_0] : memref<4x32xi32, #tpu.memory_space<vmem>>, vector<4x32xi32>
    %1 = tpu.iota {dimensions = array<i32: 1>} : vector<4x224xi32>
    %cst = arith.constant 0.000000e+00 : f32
    %2 = vector.broadcast %cst : f32 to vector<4x224xf32>
    %3 = vector.extract_strided_slice %0 {offsets = [0, 0], sizes = [4, 1], strides = [1, 1]} : vector<4x32xi32> to vector<4x1xi32>
    %4 = vector.broadcast %3 : vector<4x1xi32> to vector<4x224xi32>
    %5 = arith.cmpi eq, %4, %1 : vector<4x224xi32>
    %6 = arith.extui %5 : vector<4x224xi1> to vector<4x224xi32>
    %7 = arith.sitofp %6 : vector<4x224xi32> to vector<4x224xf32>
    %8 = arith.addf %2, %7 : vector<4x224xf32>
    %9 = vector.extract_strided_slice %0 {offsets = [0, 1], sizes = [4, 1], strides = [1, 1]} : vector<4x32xi32> to vector<4x1xi32>
    %10 = vector.broadcast %9 : vector<4x1xi32> to vector<4x224xi32>
    %11 = arith.cmpi eq, %10, %1 : vector<4x224xi32>
    %12 = arith.extui %11 : vector<4x224xi1> to vector<4x224xi32>
    %13 = arith.sitofp %12 : vector<4x224xi32> to vector<4x224xf32>
    %14 = arith.addf %8, %13 : vector<4x224xf32>
    %15 = vector.extract_strided_slice %0 {offsets = [0, 2], sizes = [4, 1], strides = [1, 1]} : vector<4x32xi32> to vector<4x1xi32>
    %16 = vector.broadcast %15 : vector<4x1xi32> to vector<4x224xi32>
    %17 = arith.cmpi eq, %16, %1 : vector<4x224xi32>
    %18 = arith.extui %17 : vector<4x224xi1> to vector<4x224xi32>
    %19 = arith.sitofp %18 : vector<4x224xi32> to vector<4x224xf32>
    %20 = arith.addf %14, %19 : vector<4x224xf32>
    %21 = vector.extract_strided_slice %0 {offsets = [0, 3], sizes = [4, 1], strides = [1, 1]} : vector<4x32xi32> to vector<4x1xi32>
    %22 = vector.broadcast %21 : vector<4x1xi32> to vector<4x224xi32>
    %23 = arith.cmpi eq, %22, %1 : vector<4x224xi32>
    %24 = arith.extui %23 : vector<4x224xi1> to vector<4x224xi32>
    %25 = arith.sitofp %24 : vector<4x224xi32> to vector<4x224xf32>
    %26 = arith.addf %20, %25 : vector<4x224xf32>
    %27 = vector.extract_strided_slice %0 {offsets = [0, 4], sizes = [4, 1], strides = [1, 1]} : vector<4x32xi32> to vector<4x1xi32>
    %28 = vector.broadcast %27 : vector<4x1xi32> to vector<4x224xi32>
    %29 = arith.cmpi eq, %28, %1 : vector<4x224xi32>
    %30 = arith.extui %29 : vector<4x224xi1> to vector<4x224xi32>
    %31 = arith.sitofp %30 : vector<4x224xi32> to vector<4x224xf32>
    %32 = arith.addf %26, %31 : vector<4x224xf32>
    %33 = vector.extract_strided_slice %0 {offsets = [0, 5], sizes = [4, 1], strides = [1, 1]} : vector<4x32xi32> to vector<4x1xi32>
    %34 = vector.broadcast %33 : vector<4x1xi32> to vector<4x224xi32>
    %35 = arith.cmpi eq, %34, %1 : vector<4x224xi32>
    %36 = arith.extui %35 : vector<4x224xi1> to vector<4x224xi32>
    %37 = arith.sitofp %36 : vector<4x224xi32> to vector<4x224xf32>
    %38 = arith.addf %32, %37 : vector<4x224xf32>
    %39 = vector.extract_strided_slice %0 {offsets = [0, 6], sizes = [4, 1], strides = [1, 1]} : vector<4x32xi32> to vector<4x1xi32>
    %40 = vector.broadcast %39 : vector<4x1xi32> to vector<4x224xi32>
    %41 = arith.cmpi eq, %40, %1 : vector<4x224xi32>
    %42 = arith.extui %41 : vector<4x224xi1> to vector<4x224xi32>
    %43 = arith.sitofp %42 : vector<4x224xi32> to vector<4x224xf32>
    %44 = arith.addf %38, %43 : vector<4x224xf32>
    %45 = vector.extract_strided_slice %0 {offsets = [0, 7], sizes = [4, 1], strides = [1, 1]} : vector<4x32xi32> to vector<4x1xi32>
    %46 = vector.broadcast %45 : vector<4x1xi32> to vector<4x224xi32>
    %47 = arith.cmpi eq, %46, %1 : vector<4x224xi32>
    %48 = arith.extui %47 : vector<4x224xi1> to vector<4x224xi32>
    %49 = arith.sitofp %48 : vector<4x224xi32> to vector<4x224xf32>
    %50 = arith.addf %44, %49 : vector<4x224xf32>
    %51 = vector.extract_strided_slice %0 {offsets = [0, 8], sizes = [4, 1], strides = [1, 1]} : vector<4x32xi32> to vector<4x1xi32>
    %52 = vector.broadcast %51 : vector<4x1xi32> to vector<4x224xi32>
    %53 = arith.cmpi eq, %52, %1 : vector<4x224xi32>
    %54 = arith.extui %53 : vector<4x224xi1> to vector<4x224xi32>
    %55 = arith.sitofp %54 : vector<4x224xi32> to vector<4x224xf32>
    %56 = arith.addf %50, %55 : vector<4x224xf32>
    %57 = vector.extract_strided_slice %0 {offsets = [0, 9], sizes = [4, 1], strides = [1, 1]} : vector<4x32xi32> to vector<4x1xi32>
    %58 = vector.broadcast %57 : vector<4x1xi32> to vector<4x224xi32>
    %59 = arith.cmpi eq, %58, %1 : vector<4x224xi32>
    %60 = arith.extui %59 : vector<4x224xi1> to vector<4x224xi32>
    %61 = arith.sitofp %60 : vector<4x224xi32> to vector<4x224xf32>
    %62 = arith.addf %56, %61 : vector<4x224xf32>
    %63 = vector.extract_strided_slice %0 {offsets = [0, 10], sizes = [4, 1], strides = [1, 1]} : vector<4x32xi32> to vector<4x1xi32>
    %64 = vector.broadcast %63 : vector<4x1xi32> to vector<4x224xi32>
    %65 = arith.cmpi eq, %64, %1 : vector<4x224xi32>
    %66 = arith.extui %65 : vector<4x224xi1> to vector<4x224xi32>
    %67 = arith.sitofp %66 : vector<4x224xi32> to vector<4x224xf32>
    %68 = arith.addf %62, %67 : vector<4x224xf32>
    %69 = vector.extract_strided_slice %0 {offsets = [0, 11], sizes = [4, 1], strides = [1, 1]} : vector<4x32xi32> to vector<4x1xi32>
    %70 = vector.broadcast %69 : vector<4x1xi32> to vector<4x224xi32>
    %71 = arith.cmpi eq, %70, %1 : vector<4x224xi32>
    %72 = arith.extui %71 : vector<4x224xi1> to vector<4x224xi32>
    %73 = arith.sitofp %72 : vector<4x224xi32> to vector<4x224xf32>
    %74 = arith.addf %68, %73 : vector<4x224xf32>
    %75 = vector.extract_strided_slice %0 {offsets = [0, 12], sizes = [4, 1], strides = [1, 1]} : vector<4x32xi32> to vector<4x1xi32>
    %76 = vector.broadcast %75 : vector<4x1xi32> to vector<4x224xi32>
    %77 = arith.cmpi eq, %76, %1 : vector<4x224xi32>
    %78 = arith.extui %77 : vector<4x224xi1> to vector<4x224xi32>
    %79 = arith.sitofp %78 : vector<4x224xi32> to vector<4x224xf32>
    %80 = arith.addf %74, %79 : vector<4x224xf32>
    %81 = vector.extract_strided_slice %0 {offsets = [0, 13], sizes = [4, 1], strides = [1, 1]} : vector<4x32xi32> to vector<4x1xi32>
    %82 = vector.broadcast %81 : vector<4x1xi32> to vector<4x224xi32>
    %83 = arith.cmpi eq, %82, %1 : vector<4x224xi32>
    %84 = arith.extui %83 : vector<4x224xi1> to vector<4x224xi32>
    %85 = arith.sitofp %84 : vector<4x224xi32> to vector<4x224xf32>
    %86 = arith.addf %80, %85 : vector<4x224xf32>
    %87 = vector.extract_strided_slice %0 {offsets = [0, 14], sizes = [4, 1], strides = [1, 1]} : vector<4x32xi32> to vector<4x1xi32>
    %88 = vector.broadcast %87 : vector<4x1xi32> to vector<4x224xi32>
    %89 = arith.cmpi eq, %88, %1 : vector<4x224xi32>
    %90 = arith.extui %89 : vector<4x224xi1> to vector<4x224xi32>
    %91 = arith.sitofp %90 : vector<4x224xi32> to vector<4x224xf32>
    %92 = arith.addf %86, %91 : vector<4x224xf32>
    %93 = vector.extract_strided_slice %0 {offsets = [0, 15], sizes = [4, 1], strides = [1, 1]} : vector<4x32xi32> to vector<4x1xi32>
    %94 = vector.broadcast %93 : vector<4x1xi32> to vector<4x224xi32>
    %95 = arith.cmpi eq, %94, %1 : vector<4x224xi32>
    %96 = arith.extui %95 : vector<4x224xi1> to vector<4x224xi32>
    %97 = arith.sitofp %96 : vector<4x224xi32> to vector<4x224xf32>
    %98 = arith.addf %92, %97 : vector<4x224xf32>
    %99 = vector.extract_strided_slice %0 {offsets = [0, 16], sizes = [4, 1], strides = [1, 1]} : vector<4x32xi32> to vector<4x1xi32>
    %100 = vector.broadcast %99 : vector<4x1xi32> to vector<4x224xi32>
    %101 = arith.cmpi eq, %100, %1 : vector<4x224xi32>
    %102 = arith.extui %101 : vector<4x224xi1> to vector<4x224xi32>
    %103 = arith.sitofp %102 : vector<4x224xi32> to vector<4x224xf32>
    %104 = arith.addf %98, %103 : vector<4x224xf32>
    %105 = vector.extract_strided_slice %0 {offsets = [0, 17], sizes = [4, 1], strides = [1, 1]} : vector<4x32xi32> to vector<4x1xi32>
    %106 = vector.broadcast %105 : vector<4x1xi32> to vector<4x224xi32>
    %107 = arith.cmpi eq, %106, %1 : vector<4x224xi32>
    %108 = arith.extui %107 : vector<4x224xi1> to vector<4x224xi32>
    %109 = arith.sitofp %108 : vector<4x224xi32> to vector<4x224xf32>
    %110 = arith.addf %104, %109 : vector<4x224xf32>
    %111 = vector.extract_strided_slice %0 {offsets = [0, 18], sizes = [4, 1], strides = [1, 1]} : vector<4x32xi32> to vector<4x1xi32>
    %112 = vector.broadcast %111 : vector<4x1xi32> to vector<4x224xi32>
    %113 = arith.cmpi eq, %112, %1 : vector<4x224xi32>
    %114 = arith.extui %113 : vector<4x224xi1> to vector<4x224xi32>
    %115 = arith.sitofp %114 : vector<4x224xi32> to vector<4x224xf32>
    %116 = arith.addf %110, %115 : vector<4x224xf32>
    %117 = vector.extract_strided_slice %0 {offsets = [0, 19], sizes = [4, 1], strides = [1, 1]} : vector<4x32xi32> to vector<4x1xi32>
    %118 = vector.broadcast %117 : vector<4x1xi32> to vector<4x224xi32>
    %119 = arith.cmpi eq, %118, %1 : vector<4x224xi32>
    %120 = arith.extui %119 : vector<4x224xi1> to vector<4x224xi32>
    %121 = arith.sitofp %120 : vector<4x224xi32> to vector<4x224xf32>
    %122 = arith.addf %116, %121 : vector<4x224xf32>
    %123 = vector.extract_strided_slice %0 {offsets = [0, 20], sizes = [4, 1], strides = [1, 1]} : vector<4x32xi32> to vector<4x1xi32>
    %124 = vector.broadcast %123 : vector<4x1xi32> to vector<4x224xi32>
    %125 = arith.cmpi eq, %124, %1 : vector<4x224xi32>
    %126 = arith.extui %125 : vector<4x224xi1> to vector<4x224xi32>
    %127 = arith.sitofp %126 : vector<4x224xi32> to vector<4x224xf32>
    %128 = arith.addf %122, %127 : vector<4x224xf32>
    %129 = vector.extract_strided_slice %0 {offsets = [0, 21], sizes = [4, 1], strides = [1, 1]} : vector<4x32xi32> to vector<4x1xi32>
    %130 = vector.broadcast %129 : vector<4x1xi32> to vector<4x224xi32>
    %131 = arith.cmpi eq, %130, %1 : vector<4x224xi32>
    %132 = arith.extui %131 : vector<4x224xi1> to vector<4x224xi32>
    %133 = arith.sitofp %132 : vector<4x224xi32> to vector<4x224xf32>
    %134 = arith.addf %128, %133 : vector<4x224xf32>
    %135 = vector.extract_strided_slice %0 {offsets = [0, 22], sizes = [4, 1], strides = [1, 1]} : vector<4x32xi32> to vector<4x1xi32>
    %136 = vector.broadcast %135 : vector<4x1xi32> to vector<4x224xi32>
    %137 = arith.cmpi eq, %136, %1 : vector<4x224xi32>
    %138 = arith.extui %137 : vector<4x224xi1> to vector<4x224xi32>
    %139 = arith.sitofp %138 : vector<4x224xi32> to vector<4x224xf32>
    %140 = arith.addf %134, %139 : vector<4x224xf32>
    %141 = vector.extract_strided_slice %0 {offsets = [0, 23], sizes = [4, 1], strides = [1, 1]} : vector<4x32xi32> to vector<4x1xi32>
    %142 = vector.broadcast %141 : vector<4x1xi32> to vector<4x224xi32>
    %143 = arith.cmpi eq, %142, %1 : vector<4x224xi32>
    %144 = arith.extui %143 : vector<4x224xi1> to vector<4x224xi32>
    %145 = arith.sitofp %144 : vector<4x224xi32> to vector<4x224xf32>
    %146 = arith.addf %140, %145 : vector<4x224xf32>
    %147 = vector.extract_strided_slice %0 {offsets = [0, 24], sizes = [4, 1], strides = [1, 1]} : vector<4x32xi32> to vector<4x1xi32>
    %148 = vector.broadcast %147 : vector<4x1xi32> to vector<4x224xi32>
    %149 = arith.cmpi eq, %148, %1 : vector<4x224xi32>
    %150 = arith.extui %149 : vector<4x224xi1> to vector<4x224xi32>
    %151 = arith.sitofp %150 : vector<4x224xi32> to vector<4x224xf32>
    %152 = arith.addf %146, %151 : vector<4x224xf32>
    %153 = vector.extract_strided_slice %0 {offsets = [0, 25], sizes = [4, 1], strides = [1, 1]} : vector<4x32xi32> to vector<4x1xi32>
    %154 = vector.broadcast %153 : vector<4x1xi32> to vector<4x224xi32>
    %155 = arith.cmpi eq, %154, %1 : vector<4x224xi32>
    %156 = arith.extui %155 : vector<4x224xi1> to vector<4x224xi32>
    %157 = arith.sitofp %156 : vector<4x224xi32> to vector<4x224xf32>
    %158 = arith.addf %152, %157 : vector<4x224xf32>
    %159 = vector.extract_strided_slice %0 {offsets = [0, 26], sizes = [4, 1], strides = [1, 1]} : vector<4x32xi32> to vector<4x1xi32>
    %160 = vector.broadcast %159 : vector<4x1xi32> to vector<4x224xi32>
    %161 = arith.cmpi eq, %160, %1 : vector<4x224xi32>
    %162 = arith.extui %161 : vector<4x224xi1> to vector<4x224xi32>
    %163 = arith.sitofp %162 : vector<4x224xi32> to vector<4x224xf32>
    %164 = arith.addf %158, %163 : vector<4x224xf32>
    %165 = vector.extract_strided_slice %0 {offsets = [0, 27], sizes = [4, 1], strides = [1, 1]} : vector<4x32xi32> to vector<4x1xi32>
    %166 = vector.broadcast %165 : vector<4x1xi32> to vector<4x224xi32>
    %167 = arith.cmpi eq, %166, %1 : vector<4x224xi32>
    %168 = arith.extui %167 : vector<4x224xi1> to vector<4x224xi32>
    %169 = arith.sitofp %168 : vector<4x224xi32> to vector<4x224xf32>
    %170 = arith.addf %164, %169 : vector<4x224xf32>
    %171 = vector.extract_strided_slice %0 {offsets = [0, 28], sizes = [4, 1], strides = [1, 1]} : vector<4x32xi32> to vector<4x1xi32>
    %172 = vector.broadcast %171 : vector<4x1xi32> to vector<4x224xi32>
    %173 = arith.cmpi eq, %172, %1 : vector<4x224xi32>
    %174 = arith.extui %173 : vector<4x224xi1> to vector<4x224xi32>
    %175 = arith.sitofp %174 : vector<4x224xi32> to vector<4x224xf32>
    %176 = arith.addf %170, %175 : vector<4x224xf32>
    %177 = vector.extract_strided_slice %0 {offsets = [0, 29], sizes = [4, 1], strides = [1, 1]} : vector<4x32xi32> to vector<4x1xi32>
    %178 = vector.broadcast %177 : vector<4x1xi32> to vector<4x224xi32>
    %179 = arith.cmpi eq, %178, %1 : vector<4x224xi32>
    %180 = arith.extui %179 : vector<4x224xi1> to vector<4x224xi32>
    %181 = arith.sitofp %180 : vector<4x224xi32> to vector<4x224xf32>
    %182 = arith.addf %176, %181 : vector<4x224xf32>
    %183 = vector.extract_strided_slice %0 {offsets = [0, 30], sizes = [4, 1], strides = [1, 1]} : vector<4x32xi32> to vector<4x1xi32>
    %184 = vector.broadcast %183 : vector<4x1xi32> to vector<4x224xi32>
    %185 = arith.cmpi eq, %184, %1 : vector<4x224xi32>
    %186 = arith.extui %185 : vector<4x224xi1> to vector<4x224xi32>
    %187 = arith.sitofp %186 : vector<4x224xi32> to vector<4x224xf32>
    %188 = arith.addf %182, %187 : vector<4x224xf32>
    %189 = vector.extract_strided_slice %0 {offsets = [0, 31], sizes = [4, 1], strides = [1, 1]} : vector<4x32xi32> to vector<4x1xi32>
    %190 = vector.broadcast %189 : vector<4x1xi32> to vector<4x224xi32>
    %191 = arith.cmpi eq, %190, %1 : vector<4x224xi32>
    %192 = arith.extui %191 : vector<4x224xi1> to vector<4x224xi32>
    %193 = arith.sitofp %192 : vector<4x224xi32> to vector<4x224xf32>
    %194 = arith.addf %188, %193 : vector<4x224xf32>
    %c0_1 = arith.constant 0 : index
    %c0_2 = arith.constant 0 : index
    %195 = vector.load %arg1[%c0_1, %c0_2] : memref<224x2xf32, #tpu.memory_space<vmem>>, vector<224x2xf32>
    %cst_3 = arith.constant dense<0.000000e+00> : vector<4x2xf32>
    %196 = tpu.matmul %194, %195, %cst_3 {dimension_numbers = #tpu.dot_dimension_numbers<[1], [0], [0], [1], [0, 0, 1, 1], [], []>} : vector<4x224xf32>, vector<224x2xf32>, vector<4x2xf32> -> vector<4x2xf32>
    %c0_4 = arith.constant 0 : index
    %c0_5 = arith.constant 0 : index
    %197 = vector.load %arg2[%c0_4, %c0_5] : memref<4x1xf32, #tpu.memory_space<vmem>>, vector<4x1xf32>
    %c0_6 = arith.constant 0 : index
    %c0_7 = arith.constant 0 : index
    %198 = vector.load %arg3[%c0_6, %c0_7] : memref<1x2xf32, #tpu.memory_space<vmem>>, vector<1x2xf32>
    %199 = vector.broadcast %197 : vector<4x1xf32> to vector<4x2xf32>
    %200 = vector.broadcast %198 : vector<1x2xf32> to vector<4x2xf32>
    %201 = arith.mulf %199, %200 : vector<4x2xf32>
    %202 = arith.addf %196, %201 : vector<4x2xf32>
    %c0_8 = arith.constant 0 : index
    %c0_9 = arith.constant 0 : index
    %203 = vector.load %arg4[%c0_8, %c0_9] : memref<1x2xf32, #tpu.memory_space<vmem>>, vector<1x2xf32>
    %204 = vector.broadcast %203 : vector<1x2xf32> to vector<4x2xf32>
    %205 = arith.addf %202, %204 : vector<4x2xf32>
    %c0_10 = arith.constant 0 : index
    %c0_11 = arith.constant 0 : index
    %206 = vector.load %arg5[%c0_10, %c0_11] : memref<4x2xf32, #tpu.memory_space<vmem>>, vector<4x2xf32>
    tpu.vector_store %arg5[%c0_10, %c0_11], %205 {strides = array<i32>} : memref<4x2xf32, #tpu.memory_space<vmem>>, vector<4x2xf32>,
    return
  }
}

</mosaic_0001>

<llo_original>
// kernel: tpu_custom_call.1
$region0: #{tpu_custom_call.1}
  #allocation0 [shape = 'u32[]', space=smem, size = 0x4, offset = 0x4, fixed_abs, tag = 'smem constant byte address 0x4 - core index']
  #allocation1 [shape = 'u32[72,128]{1,0:T(1,128)}', space=vmem, size = 0x9000, scoped, tag = 'internal scratch']
  %s0 = inlined_call_operand.vmem [shape: s32[4,32], index: 0, kind: input, shape index: {}]
  %s1 = inlined_call_operand.vmem [shape: f32[224,2], index: 1, kind: input, shape index: {}]
  %s2 = inlined_call_operand.vmem [shape: f32[4,1], index: 2, kind: input, shape index: {}]
  %s3 = inlined_call_operand.vmem [shape: f32[1,2], index: 3, kind: input, shape index: {}]
  %s4 = inlined_call_operand.vmem [shape: f32[1,2], index: 4, kind: input, shape index: {}]
  %s5 = inlined_call_operand.vmem [shape: f32[4,2], index: 5, kind: output, shape index: {}]
  %s6 = sld [smem:[#allocation0]]
  $region30: #{tpu_custom_call.1} parent=0
    _
  %s8 = ssub.s32 1, %s6
  %s9 = scalar_select 0, %s8, %s6
  // Predicated region
  $region2: #{tpu_custom_call.1} parent=0 // pred_check
    _
  $region3: #{tpu_custom_call.1} parent=0 // pred_check_branch
    %11 = sbr.rel (0) target = $region5
  $region4: #{tpu_custom_call.1} parent=0 // pred_region
    _
  $region5: #{tpu_custom_call.1} parent=0 // pred_fallthru
    _
  // Predicated region
  $region6: #{tpu_custom_call.1} parent=0 // pred_check
    _
  $region7: #{tpu_custom_call.1} parent=0 // pred_check_branch
    %13 = sbr.rel (0) target = $region9
  $region8: #{tpu_custom_call.1} parent=0 // pred_region
    _
  $region9: #{tpu_custom_call.1} parent=0 // pred_fallthru
    _
  // Predicated region
  $region10: #{tpu_custom_call.1} parent=0 // pred_check
    _
  $region11: #{tpu_custom_call.1} parent=0 // pred_check_branch
    %15 = sbr.rel (0) target = $region13
  $region12: #{tpu_custom_call.1} parent=0 // pred_region
    _
  $region13: #{tpu_custom_call.1} parent=0 // pred_fallthru
    _
  // Predicated region
  $region14: #{tpu_custom_call.1} parent=0 // pred_check
    _
  $region15: #{tpu_custom_call.1} parent=0 // pred_check_branch
    %17 = sbr.rel (0) target = $region17
  $region16: #{tpu_custom_call.1} parent=0 // pred_region
    _
  $region17: #{tpu_custom_call.1} parent=0 // pred_fallthru
    _
  // Predicated region
  $region18: #{tpu_custom_call.1} parent=0 // pred_check
    _
  $region19: #{tpu_custom_call.1} parent=0 // pred_check_branch
    %19 = sbr.rel (0) target = $region21
  $region20: #{tpu_custom_call.1} parent=0 // pred_region
    _
  $region21: #{tpu_custom_call.1} parent=0 // pred_fallthru
    _
  %v20 = vld [vmem:[%s0] sm:$0xf]
  %v21 = vlaneseq
  %v22 = vand.u32 %v21, 127
  %v23 = vadd.s32 %v22, 128
  %24 = vset.pattern.permute.xlu0 0
  %25 = vperm.xlu0 %24, %v20
  %v26 = vpop.permute.xlu0 %25
  %vm27 = vcmp.eq.s32.totalorder %v26, %v22
  %vm28 = vcmp.eq.s32.totalorder %v26, %v23
  %v29 = vsel %vm27, 1, 0
  %v30 = vsel %vm28, 1, 0
  %v31 = vcvt.s32.f32 %v29
  %v32 = vcvt.s32.f32 %v30
  %v33 = vadd.f32 %v31, 0.0
  %v34 = vadd.f32 %v32, 0.0
  %35 = vset.pattern.permute.xlu0 1
  %36 = vperm.xlu0 %35, %v20
  %v37 = vpop.permute.xlu0 %36
  %vm38 = vcmp.eq.s32.totalorder %v37, %v22
  %vm39 = vcmp.eq.s32.totalorder %v37, %v23
  %v40 = vsel %vm38, 1, 0
  %v41 = vsel %vm39, 1, 0
  %v42 = vcvt.s32.f32 %v40
  %v43 = vcvt.s32.f32 %v41
  %v44 = vadd.f32 %v33, %v42
  %v45 = vadd.f32 %v34, %v43
  %46 = vset.pattern.permute.xlu0 2
  %47 = vperm.xlu0 %46, %v20
  %v48 = vpop.permute.xlu0 %47
  %vm49 = vcmp.eq.s32.totalorder %v48, %v22
  %vm50 = vcmp.eq.s32.totalorder %v48, %v23
  %v51 = vsel %vm49, 1, 0
  %v52 = vsel %vm50, 1, 0
  %v53 = vcvt.s32.f32 %v51
  %v54 = vcvt.s32.f32 %v52
  %v55 = vadd.f32 %v44, %v53
  %v56 = vadd.f32 %v45, %v54
  %57 = vset.pattern.permute.xlu0 3
  %58 = vperm.xlu0 %57, %v20
  %v59 = vpop.permute.xlu0 %58
  %vm60 = vcmp.eq.s32.totalorder %v59, %v22
  %vm61 = vcmp.eq.s32.totalorder %v59, %v23
  %v62 = vsel %vm60, 1, 0
  %v63 = vsel %vm61, 1, 0
  %v64 = vcvt.s32.f32 %v62
  %v65 = vcvt.s32.f32 %v63
  %v66 = vadd.f32 %v55, %v64
  %v67 = vadd.f32 %v56, %v65
  %68 = vset.pattern.permute.xlu0 4
  %69 = vperm.xlu0 %68, %v20
  %v70 = vpop.permute.xlu0 %69
  %vm71 = vcmp.eq.s32.totalorder %v70, %v22
  %vm72 = vcmp.eq.s32.totalorder %v70, %v23
  %v73 = vsel %vm71, 1, 0
  %v74 = vsel %vm72, 1, 0
  %v75 = vcvt.s32.f32 %v73
  %v76 = vcvt.s32.f32 %v74
  %v77 = vadd.f32 %v66, %v75
  %v78 = vadd.f32 %v67, %v76
  %79 = vset.pattern.permute.xlu0 5
  %80 = vperm.xlu0 %79, %v20
  %v81 = vpop.permute.xlu0 %80
  %vm82 = vcmp.eq.s32.totalorder %v81, %v22
  %vm83 = vcmp.eq.s32.totalorder %v81, %v23
  %v84 = vsel %vm82, 1, 0
  %v85 = vsel %vm83, 1, 0
  %v86 = vcvt.s32.f32 %v84
  %v87 = vcvt.s32.f32 %v85
  %v88 = vadd.f32 %v77, %v86
  %v89 = vadd.f32 %v78, %v87
  %90 = vset.pattern.permute.xlu0 6
  %91 = vperm.xlu0 %90, %v20
  %v92 = vpop.permute.xlu0 %91
  %vm93 = vcmp.eq.s32.totalorder %v92, %v22
  %vm94 = vcmp.eq.s32.totalorder %v92, %v23
  %v95 = vsel %vm93, 1, 0
  %v96 = vsel %vm94, 1, 0
  %v97 = vcvt.s32.f32 %v95
  %v98 = vcvt.s32.f32 %v96
  %v99 = vadd.f32 %v88, %v97
  %v100 = vadd.f32 %v89, %v98
  %101 = vset.pattern.permute.xlu0 7
  %102 = vperm.xlu0 %101, %v20
  %v103 = vpop.permute.xlu0 %102
  %vm104 = vcmp.eq.s32.totalorder %v103, %v22
  %vm105 = vcmp.eq.s32.totalorder %v103, %v23
  %v106 = vsel %vm104, 1, 0
  %v107 = vsel %vm105, 1, 0
  %v108 = vcvt.s32.f32 %v106
  %v109 = vcvt.s32.f32 %v107
  %v110 = vadd.f32 %v99, %v108
  %v111 = vadd.f32 %v100, %v109
  %112 = vset.pattern.permute.xlu0 8
  %113 = vperm.xlu0 %112, %v20
  %v114 = vpop.permute.xlu0 %113
  %vm115 = vcmp.eq.s32.totalorder %v114, %v22
  %vm116 = vcmp.eq.s32.totalorder %v114, %v23
  %v117 = vsel %vm115, 1, 0
  %v118 = vsel %vm116, 1, 0
  %v119 = vcvt.s32.f32 %v117
  %v120 = vcvt.s32.f32 %v118
  %v121 = vadd.f32 %v110, %v119
  %v122 = vadd.f32 %v111, %v120
  %123 = vset.pattern.permute.xlu0 9
  %124 = vperm.xlu0 %123, %v20
  %v125 = vpop.permute.xlu0 %124
  %vm126 = vcmp.eq.s32.totalorder %v125, %v22
  %vm127 = vcmp.eq.s32.totalorder %v125, %v23
  %v128 = vsel %vm126, 1, 0
  %v129 = vsel %vm127, 1, 0
  %v130 = vcvt.s32.f32 %v128
  %v131 = vcvt.s32.f32 %v129
  %v132 = vadd.f32 %v121, %v130
  %v133 = vadd.f32 %v122, %v131
  %134 = vset.pattern.permute.xlu0 10
  %135 = vperm.xlu0 %134, %v20
  %v136 = vpop.permute.xlu0 %135
  %vm137 = vcmp.eq.s32.totalorder %v136, %v22
  %vm138 = vcmp.eq.s32.totalorder %v136, %v23
  %v139 = vsel %vm137, 1, 0
  %v140 = vsel %vm138, 1, 0
  %v141 = vcvt.s32.f32 %v139
  %v142 = vcvt.s32.f32 %v140
  %v143 = vadd.f32 %v132, %v141
  %v144 = vadd.f32 %v133, %v142
  %145 = vset.pattern.permute.xlu0 11
  %146 = vperm.xlu0 %145, %v20
  %v147 = vpop.permute.xlu0 %146
  %vm148 = vcmp.eq.s32.totalorder %v147, %v22
  %vm149 = vcmp.eq.s32.totalorder %v147, %v23
  %v150 = vsel %vm148, 1, 0
  %v151 = vsel %vm149, 1, 0
  %v152 = vcvt.s32.f32 %v150
  %v153 = vcvt.s32.f32 %v151
  %v154 = vadd.f32 %v143, %v152
  %v155 = vadd.f32 %v144, %v153
  %156 = vset.pattern.permute.xlu0 12
  %157 = vperm.xlu0 %156, %v20
  %v158 = vpop.permute.xlu0 %157
  %vm159 = vcmp.eq.s32.totalorder %v158, %v22
  %vm160 = vcmp.eq.s32.totalorder %v158, %v23
  %v161 = vsel %vm159, 1, 0
  %v162 = vsel %vm160, 1, 0
  %v163 = vcvt.s32.f32 %v161
  %v164 = vcvt.s32.f32 %v162
  %v165 = vadd.f32 %v154, %v163
  %v166 = vadd.f32 %v155, %v164
  %167 = vset.pattern.permute.xlu0 13
  %168 = vperm.xlu0 %167, %v20
  %v169 = vpop.permute.xlu0 %168
  %vm170 = vcmp.eq.s32.totalorder %v169, %v22
  %vm171 = vcmp.eq.s32.totalorder %v169, %v23
  %v172 = vsel %vm170, 1, 0
  %v173 = vsel %vm171, 1, 0
  %v174 = vcvt.s32.f32 %v172
  %v175 = vcvt.s32.f32 %v173
  %v176 = vadd.f32 %v165, %v174
  %v177 = vadd.f32 %v166, %v175
  %178 = vset.pattern.permute.xlu0 14
  %179 = vperm.xlu0 %178, %v20
  %v180 = vpop.permute.xlu0 %179
  %vm181 = vcmp.eq.s32.totalorder %v180, %v22
  %vm182 = vcmp.eq.s32.totalorder %v180, %v23
  %v183 = vsel %vm181, 1, 0
  %v184 = vsel %vm182, 1, 0
  %v185 = vcvt.s32.f32 %v183
  %v186 = vcvt.s32.f32 %v184
  %v187 = vadd.f32 %v176, %v185
  %v188 = vadd.f32 %v177, %v186
  %189 = vset.pattern.permute.xlu0 15
  %190 = vperm.xlu0 %189, %v20
  %v191 = vpop.permute.xlu0 %190
  %vm192 = vcmp.eq.s32.totalorder %v191, %v22
  %vm193 = vcmp.eq.s32.totalorder %v191, %v23
  %v194 = vsel %vm192, 1, 0
  %v195 = vsel %vm193, 1, 0
  %v196 = vcvt.s32.f32 %v194
  %v197 = vcvt.s32.f32 %v195
  %v198 = vadd.f32 %v187, %v196
  %v199 = vadd.f32 %v188, %v197
  %200 = vset.pattern.permute.xlu0 16
  %201 = vperm.xlu0 %200, %v20
  %v202 = vpop.permute.xlu0 %201
  %vm203 = vcmp.eq.s32.totalorder %v202, %v22
  %vm204 = vcmp.eq.s32.totalorder %v202, %v23
  %v205 = vsel %vm203, 1, 0
  %v206 = vsel %vm204, 1, 0
  %v207 = vcvt.s32.f32 %v205
  %v208 = vcvt.s32.f32 %v206
  %v209 = vadd.f32 %v198, %v207
  %v210 = vadd.f32 %v199, %v208
  %211 = vset.pattern.permute.xlu0 17
  %212 = vperm.xlu0 %211, %v20
  %v213 = vpop.permute.xlu0 %212
  %vm214 = vcmp.eq.s32.totalorder %v213, %v22
  %vm215 = vcmp.eq.s32.totalorder %v213, %v23
  %v216 = vsel %vm214, 1, 0
  %v217 = vsel %vm215, 1, 0
  %v218 = vcvt.s32.f32 %v216
  %v219 = vcvt.s32.f32 %v217
  %v220 = vadd.f32 %v209, %v218
  %v221 = vadd.f32 %v210, %v219
  %222 = vset.pattern.permute.xlu0 18
  %223 = vperm.xlu0 %222, %v20
  %v224 = vpop.permute.xlu0 %223
  %vm225 = vcmp.eq.s32.totalorder %v224, %v22
  %vm226 = vcmp.eq.s32.totalorder %v224, %v23
  %v227 = vsel %vm225, 1, 0
  %v228 = vsel %vm226, 1, 0
  %v229 = vcvt.s32.f32 %v227
  %v230 = vcvt.s32.f32 %v228
  %v231 = vadd.f32 %v220, %v229
  %v232 = vadd.f32 %v221, %v230
  %233 = vset.pattern.permute.xlu0 19
  %234 = vperm.xlu0 %233, %v20
  %v235 = vpop.permute.xlu0 %234
  %vm236 = vcmp.eq.s32.totalorder %v235, %v22
  %vm237 = vcmp.eq.s32.totalorder %v235, %v23
  %v238 = vsel %vm236, 1, 0
  %v239 = vsel %vm237, 1, 0
  %v240 = vcvt.s32.f32 %v238
  %v241 = vcvt.s32.f32 %v239
  %v242 = vadd.f32 %v231, %v240
  %v243 = vadd.f32 %v232, %v241
  %244 = vset.pattern.permute.xlu0 20
  %245 = vperm.xlu0 %244, %v20
  %v246 = vpop.permute.xlu0 %245
  %vm247 = vcmp.eq.s32.totalorder %v246, %v22
  %vm248 = vcmp.eq.s32.totalorder %v246, %v23
  %v249 = vsel %vm247, 1, 0
  %v250 = vsel %vm248, 1, 0
  %v251 = vcvt.s32.f32 %v249
  %v252 = vcvt.s32.f32 %v250
  %v253 = vadd.f32 %v242, %v251
  %v254 = vadd.f32 %v243, %v252
  %255 = vset.pattern.permute.xlu0 21
  %256 = vperm.xlu0 %255, %v20
  %v257 = vpop.permute.xlu0 %256
  %vm258 = vcmp.eq.s32.totalorder %v257, %v22
  %vm259 = vcmp.eq.s32.totalorder %v257, %v23
  %v260 = vsel %vm258, 1, 0
  %v261 = vsel %vm259, 1, 0
  %v262 = vcvt.s32.f32 %v260
  %v263 = vcvt.s32.f32 %v261
  %v264 = vadd.f32 %v253, %v262
  %v265 = vadd.f32 %v254, %v263
  %266 = vset.pattern.permute.xlu0 22
  %267 = vperm.xlu0 %266, %v20
  %v268 = vpop.permute.xlu0 %267
  %vm269 = vcmp.eq.s32.totalorder %v268, %v22
  %vm270 = vcmp.eq.s32.totalorder %v268, %v23
  %v271 = vsel %vm269, 1, 0
  %v272 = vsel %vm270, 1, 0
  %v273 = vcvt.s32.f32 %v271
  %v274 = vcvt.s32.f32 %v272
  %v275 = vadd.f32 %v264, %v273
  %v276 = vadd.f32 %v265, %v274
  %277 = vset.pattern.permute.xlu0 23
  %278 = vperm.xlu0 %277, %v20
  %v279 = vpop.permute.xlu0 %278
  %vm280 = vcmp.eq.s32.totalorder %v279, %v22
  %vm281 = vcmp.eq.s32.totalorder %v279, %v23
  %v282 = vsel %vm280, 1, 0
  %v283 = vsel %vm281, 1, 0
  %v284 = vcvt.s32.f32 %v282
  %v285 = vcvt.s32.f32 %v283
  %v286 = vadd.f32 %v275, %v284
  %v287 = vadd.f32 %v276, %v285
  %288 = vset.pattern.permute.xlu0 24
  %289 = vperm.xlu0 %288, %v20
  %v290 = vpop.permute.xlu0 %289
  %vm291 = vcmp.eq.s32.totalorder %v290, %v22
  %vm292 = vcmp.eq.s32.totalorder %v290, %v23
  %v293 = vsel %vm291, 1, 0
  %v294 = vsel %vm292, 1, 0
  %v295 = vcvt.s32.f32 %v293
  %v296 = vcvt.s32.f32 %v294
  %v297 = vadd.f32 %v286, %v295
  %v298 = vadd.f32 %v287, %v296
  %299 = vset.pattern.permute.xlu0 25
  %300 = vperm.xlu0 %299, %v20
  %v301 = vpop.permute.xlu0 %300
  %vm302 = vcmp.eq.s32.totalorder %v301, %v22
  %vm303 = vcmp.eq.s32.totalorder %v301, %v23
  %v304 = vsel %vm302, 1, 0
  %v305 = vsel %vm303, 1, 0
  %v306 = vcvt.s32.f32 %v304
  %v307 = vcvt.s32.f32 %v305
  %v308 = vadd.f32 %v297, %v306
  %v309 = vadd.f32 %v298, %v307
  %310 = vset.pattern.permute.xlu0 26
  %311 = vperm.xlu0 %310, %v20
  %v312 = vpop.permute.xlu0 %311
  %vm313 = vcmp.eq.s32.totalorder %v312, %v22
  %vm314 = vcmp.eq.s32.totalorder %v312, %v23
  %v315 = vsel %vm313, 1, 0
  %v316 = vsel %vm314, 1, 0
  %v317 = vcvt.s32.f32 %v315
  %v318 = vcvt.s32.f32 %v316
  %v319 = vadd.f32 %v308, %v317
  %v320 = vadd.f32 %v309, %v318
  %321 = vset.pattern.permute.xlu0 27
  %322 = vperm.xlu0 %321, %v20
  %v323 = vpop.permute.xlu0 %322
  %vm324 = vcmp.eq.s32.totalorder %v323, %v22
  %vm325 = vcmp.eq.s32.totalorder %v323, %v23
  %v326 = vsel %vm324, 1, 0
  %v327 = vsel %vm325, 1, 0
  %v328 = vcvt.s32.f32 %v326
  %v329 = vcvt.s32.f32 %v327
  %v330 = vadd.f32 %v319, %v328
  %v331 = vadd.f32 %v320, %v329
  %332 = vset.pattern.permute.xlu0 28
  %333 = vperm.xlu0 %332, %v20
  %v334 = vpop.permute.xlu0 %333
  %vm335 = vcmp.eq.s32.totalorder %v334, %v22
  %vm336 = vcmp.eq.s32.totalorder %v334, %v23
  %v337 = vsel %vm335, 1, 0
  %v338 = vsel %vm336, 1, 0
  %v339 = vcvt.s32.f32 %v337
  %v340 = vcvt.s32.f32 %v338
  %v341 = vadd.f32 %v330, %v339
  %v342 = vadd.f32 %v331, %v340
  %343 = vset.pattern.permute.xlu0 29
  %344 = vperm.xlu0 %343, %v20
  %v345 = vpop.permute.xlu0 %344
  %vm346 = vcmp.eq.s32.totalorder %v345, %v22
  %vm347 = vcmp.eq.s32.totalorder %v345, %v23
  %v348 = vsel %vm346, 1, 0
  %v349 = vsel %vm347, 1, 0
  %v350 = vcvt.s32.f32 %v348
  %v351 = vcvt.s32.f32 %v349
  %v352 = vadd.f32 %v341, %v350
  %v353 = vadd.f32 %v342, %v351
  %354 = vset.pattern.permute.xlu0 30
  %355 = vperm.xlu0 %354, %v20
  %v356 = vpop.permute.xlu0 %355
  %vm357 = vcmp.eq.s32.totalorder %v356, %v22
  %vm358 = vcmp.eq.s32.totalorder %v356, %v23
  %v359 = vsel %vm357, 1, 0
  %v360 = vsel %vm358, 1, 0
  %v361 = vcvt.s32.f32 %v359
  %v362 = vcvt.s32.f32 %v360
  %v363 = vadd.f32 %v352, %v361
  %v364 = vadd.f32 %v353, %v362
  %365 = vset.pattern.permute.xlu0 31
  %366 = vperm.xlu0 %365, %v20
  %v367 = vpop.permute.xlu0 %366
  %vm368 = vcmp.eq.s32.totalorder %v367, %v22
  %vm369 = vcmp.eq.s32.totalorder %v367, %v23
  %v370 = vsel %vm368, 1, 0
  %v371 = vsel %vm369, 1, 0
  %v372 = vcvt.s32.f32 %v370
  %v373 = vcvt.s32.f32 %v371
  %v374 = vadd.f32 %v363, %v372
  %v375 = vadd.f32 %v364, %v373
  %v376 = vld [vmem:[%s1] sm:$0xff]
  %v377 = vld [vmem:[%s1 + $0x8] sm:$0xff]
  %v378 = vld [vmem:[%s1 + $0x10] sm:$0xff]
  %v379 = vld [vmem:[%s1 + $0x18] sm:$0xff]
  %v380 = vld [vmem:[%s1 + $0x20] sm:$0xff]
  %v381 = vld [vmem:[%s1 + $0x28] sm:$0xff]
  %v382 = vld [vmem:[%s1 + $0x30] sm:$0xff]
  %v383 = vld [vmem:[%s1 + $0x38] sm:$0xff]
  %v384 = vld [vmem:[%s1 + $0x40] sm:$0xff]
  %v385 = vld [vmem:[%s1 + $0x48] sm:$0xff]
  %v386 = vld [vmem:[%s1 + $0x50] sm:$0xff]
  %v387 = vld [vmem:[%s1 + $0x58] sm:$0xff]
  %v388 = vld [vmem:[%s1 + $0x60] sm:$0xff]
  %v389 = vld [vmem:[%s1 + $0x68] sm:$0xff]
  %v390 = vld [vmem:[%s1 + $0x70] sm:$0xff]
  %v391 = vld [vmem:[%s1 + $0x78] sm:$0xff]
  %v392 = vld [vmem:[%s1 + $0x80] sm:$0xff]
  %v393 = vld [vmem:[%s1 + $0x88] sm:$0xff]
  %v394 = vld [vmem:[%s1 + $0x90] sm:$0xff]
  %v395 = vld [vmem:[%s1 + $0x98] sm:$0xff]
  %v396 = vld [vmem:[%s1 + $0xa0] sm:$0xff]
  %v397 = vld [vmem:[%s1 + $0xa8] sm:$0xff]
  %v398 = vld [vmem:[%s1 + $0xb0] sm:$0xff]
  %v399 = vld [vmem:[%s1 + $0xb8] sm:$0xff]
  %v400 = vld [vmem:[%s1 + $0xc0] sm:$0xff]
  %v401 = vld [vmem:[%s1 + $0xc8] sm:$0xff]
  %v402 = vld [vmem:[%s1 + $0xd0] sm:$0xff]
  %v403 = vld [vmem:[%s1 + $0xd8] sm:$0xff]
  %v404 = vld [vmem:[%s2] sm:$0xf]
  %v405 = vld [vmem:[%s3] sm:$0x1]
  %407 = vset.pattern.permute.xlu0 0
  %408 = vperm.xlu0 %407, %v404
  %v409 = vpop.permute.xlu0 %408
  %v412 = vperm.slane %v405, 0
  %v414 = vmul.f32 %v409, %v412
  %vm415 = vcmask 785408
  %v417 = vsel %vm415, %v375, 0
  %419 = vmatpush.msra.mxu0 %v391
  %420 = vmatpush.msra.mxu0 %v390
  %421 = vmatpush.msra.mxu0 %v389
  %422 = vmatpush.msra.mxu0 %v388
  %423 = vmatpush.msra.mxu0 %v387
  %424 = vmatpush.msra.mxu0 %v386
  %425 = vmatpush.msra.mxu0 %v385
  %426 = vmatpush.msra.mxu0 %v384
  %427 = vmatpush.msra.mxu0 %v383
  %428 = vmatpush.msra.mxu0 %v382
  %429 = vmatpush.msra.mxu0 %v381
  %430 = vmatpush.msra.mxu0 %v380
  %431 = vmatpush.msra.mxu0 %v379
  %432 = vmatpush.msra.mxu0 %v378
  %433 = vmatpush.msra.mxu0 %v377
  %434 = vmatpush.msra.mxu0 %v376
  %435 = vmatmul.f32.gmra.mxu0 %v374
  %v436 = vpop.f32.mrf.mxu0
  %v437 = vadd.f32 %v414, %v436
  %438 = vdwg.mxu0
  %439 = vmatpush.msra.mxu0 0.0
  %440 = vmatpush.msra.mxu0 0.0
  %441 = vmatpush.msra.mxu0 0.0
  %442 = vmatpush.msra.mxu0 0.0
  %443 = vmatpush.msra.mxu0 %v403
  %444 = vmatpush.msra.mxu0 %v402
  %445 = vmatpush.msra.mxu0 %v401
  %446 = vmatpush.msra.mxu0 %v400
  %447 = vmatpush.msra.mxu0 %v399
  %448 = vmatpush.msra.mxu0 %v398
  %449 = vmatpush.msra.mxu0 %v397
  %450 = vmatpush.msra.mxu0 %v396
  %451 = vmatpush.msra.mxu0 %v395
  %452 = vmatpush.msra.mxu0 %v394
  %453 = vmatpush.msra.mxu0 %v393
  %454 = vmatpush.msra.mxu0 %v392
  %455 = vmatmul.f32.gmra.mxu0 %v417
  %v456 = vpop.f32.mrf.mxu0
  %v457 = vadd.f32 %v437, %v456
  %458 = vdwg.mxu0
  %v459 = vld [vmem:[%s4] sm:$0x1]
  %v461 = vperm.slane %v459, 0
  %v463 = vadd.f32 %v457, %v461
  %vm464 = vcmask 11264
  %465 = vst.msk [vmem:[%s5] sm:$0xf] %vm464, %v463
  // Predicated region
  $region22: #{tpu_custom_call.1} parent=0 // pred_check
    _
  $region23: #{tpu_custom_call.1} parent=0 // pred_check_branch
    %467 = sbr.rel (0) target = $region25
  $region24: #{tpu_custom_call.1} parent=0 // pred_region
    _
  $region25: #{tpu_custom_call.1} parent=0 // pred_fallthru
    _
  // Predicated region
  $region26: #{tpu_custom_call.1} parent=0 // pred_check
    _
  $region27: #{tpu_custom_call.1} parent=0 // pred_check_branch
    %469 = sbr.rel (0) target = $region29
  $region28: #{tpu_custom_call.1} parent=0 // pred_region
    _
  $region29: #{tpu_custom_call.1} parent=0 // pred_fallthru
    _

</llo_original>
